<compile_context>
chip_gen: v6e
topology: v6e:2x2x1
jax: 0.10.0
libtpu: 0.0.40
codegen_flags: <defaults>
</compile_context>

<pallas_src>
import jax
import jax.numpy as jnp
from jax import lax
from jax.experimental import pallas as pl
from jax.experimental.pallas import tpu as pltpu


_CHUNK = 256       # frames per inner fori_loop chunk inside a block
_TB_MAX = 1024     # frames per grid step for large inputs


def _choose_grid(bt):
    """Return (TB, BT_pad, steps).

    TB (frames per grid step) is a multiple of 8.  Large problems use blocks
    made of whole _CHUNK-frame chunks and an even number of grid steps
    (balances v7x's two TensorCores; harmless on v5e/v6e single-TC chips)."""
    bt8 = -(-bt // 8) * 8
    if bt8 <= 2 * _CHUNK:                       # small problem: one block
        return bt8, bt8, 1
    n_chunks = -(-bt8 // _CHUNK)
    cpb = min(_TB_MAX // _CHUNK, n_chunks)      # chunks per block
    steps = -(-n_chunks // cpb)
    if steps > 1 and steps % 2 == 1:            # even step count for v7x
        steps += 1
        cpb = -(-n_chunks // steps)
    tb = cpb * _CHUNK
    return tb, steps * tb, steps


def _make_radar_kernel(tb, ch, n_pts, hid, feat):
    """Kernel closure over the static tiling parameters.

    x_ref : (TB, N*Din)  bf16   w1_ref: (N*Din, N*H) bf16 (block-diagonal)
    b1_ref: (1, N*H)     f32    w2_ref: (2H, 2F)     bf16 (block-diagonal pair)
    b2_ref: (1, 2F)      f32    o_ref : (TB, F)      f32
    """
    n_chunks = tb // ch
    n_pairs = n_pts // 2   # N is made even in the wrapper

    def kernel(x_ref, w1_ref, b1_ref, w2_ref, b2_ref, o_ref):
        def chunk(r0):
            xc = x_ref[pl.ds(r0, ch), :]                       # (ch, N*Din) bf16
            # Layer 1 for all N points at once (block-diag weight -> M = ch).
            h = jnp.dot(xc, w1_ref[...], preferred_element_type=jnp.float32)
            h = jnp.maximum(h + b1_ref[...], 0.0)              # (ch, N*H) f32
            h = h.astype(jnp.bfloat16)
            # Layer 2 + running point-max, two points per matmul.
            # 2*hid == 128 keeps every lane slice whole-vreg aligned.
            acc = jnp.zeros((ch, feat), jnp.float32)
            for p in range(n_pairs):                           # static, short
                hp = h[:, 2 * hid * p: 2 * hid * (p + 1)]      # (ch, 2H)
                fp = jnp.dot(hp, w2_ref[...],
                             preferred_element_type=jnp.float32)
                fp = jnp.maximum(fp + b2_ref[...], 0.0)        # (ch, 2F) f32
                acc = jnp.maximum(acc,
                                  jnp.maximum(fp[:, :feat], fp[:, feat:]))
            # ReLU outputs are >= 0, so the zero init never changes the max.
            o_ref[pl.ds(r0, ch), :] = acc.astype(o_ref.dtype)

        if n_chunks == 1:
            chunk(0)
        else:
            def loop_body(c, carry):
                chunk(pl.multiple_of(c * ch, ch))
                return carry
            lax.fori_loop(0, n_chunks, loop_body, 0)

    return kernel


def radar_encoder(x, w1, b1, w2, b2):
    """x: (B, T, N, Din) f32, weights f32 -> (B, T, F) f32."""
    B, T, N, Din = x.shape
    H = w1.shape[1]
    F = w2.shape[1]

    # Pair-wise layer-2 needs an even point count; a duplicated point never
    # changes the per-frame max.
    if N % 2 == 1:
        x = jnp.concatenate([x, x[:, :, -1:, :]], axis=2)
        N += 1

    BT = B * T
    TB, BT_pad, steps = _choose_grid(BT)
    CH = _CHUNK if TB % _CHUNK == 0 else TB

    # Lane-packed frames: (BT, N*Din) in bf16 (MXU operand dtype).
    x2 = x.reshape(BT, N * Din).astype(jnp.bfloat16)
    if BT_pad != BT:
        x2 = jnp.pad(x2, ((0, BT_pad - BT), (0, 0)))

    # Block-diagonal weights: layer 1 over all N points, layer 2 over pairs.
    w1_big = jnp.kron(jnp.eye(N, dtype=w1.dtype), w1).astype(jnp.bfloat16)     # (N*Din, N*H)
    b1_big = jnp.tile(b1.reshape(1, H), (1, N)).astype(jnp.float32)            # (1, N*H)
    w2_pair = jnp.kron(jnp.eye(2, dtype=w2.dtype), w2).astype(jnp.bfloat16)    # (2H, 2F)
    b2_pair = jnp.tile(b2.reshape(1, F), (1, 2)).astype(jnp.float32)           # (1, 2F)

    cost = pl.CostEstimate(
        flops=2 * BT * N * (Din * H + H * F),
        transcendentals=0,
        bytes_accessed=(BT_pad * N * Din * 2          # x (bf16)
                        + N * Din * N * H * 2         # W1 block-diag (bf16)
                        + 2 * H * 2 * F * 2           # W2 pair (bf16)
                        + (N * H + 2 * F) * 4         # biases (f32)
                        + BT_pad * F * 4),            # output (f32)
    )

    kernel = _make_radar_kernel(TB, CH, N, H, F)

    out = pl.pallas_call(
        kernel,
        out_shape=jax.ShapeDtypeStruct((BT_pad, F), jnp.float32),
        grid_spec=pltpu.PrefetchScalarGridSpec(
            num_scalar_prefetch=0,
            grid=(steps,),
            in_specs=[
                pl.BlockSpec((TB, N * Din), lambda i: (i, 0)),
                pl.BlockSpec((N * Din, N * H), lambda i: (0, 0)),
                pl.BlockSpec((1, N * H), lambda i: (0, 0)),
                pl.BlockSpec((2 * H, 2 * F), lambda i: (0, 0)),
                pl.BlockSpec((1, 2 * F), lambda i: (0, 0)),
            ],
            out_specs=pl.BlockSpec((TB, F), lambda i: (i, 0)),
        ),
        compiler_params=pltpu.CompilerParams(
            dimension_semantics=("parallel",),
            vmem_limit_bytes=32 * 1024 * 1024,
        ),
        cost_estimate=cost,
    )(x2, w1_big, b1_big, w2_pair, b2_pair)

    return out[:BT].reshape(B, T, F)


def radar_encoder_ref(x, w1, b1, w2, b2):
    """Pure-f32 JAX reference mirroring the PyTorch forward."""
    B, T, N, Din = x.shape
    h = jnp.maximum(x.reshape(B * T, N, Din) @ w1 + b1, 0.0)
    f = jnp.maximum(h @ w2 + b2, 0.0)
    return jnp.max(f, axis=1).reshape(B, T, -1)


def radar_encoder_ref_bf16(x, w1, b1, w2, b2):
    """Matched-precision reference: bf16 matmul operands, f32 accumulation."""
    B, T, N, Din = x.shape
    xb = x.astype(jnp.bfloat16).reshape(B * T, N, Din)
    h = jnp.einsum("mnd,dh->mnh", xb, w1.astype(jnp.bfloat16),
                   preferred_element_type=jnp.float32) + b1
    h = jnp.maximum(h, 0.0).astype(jnp.bfloat16)
    f = jnp.einsum("mnh,hf->mnf", h, w2.astype(jnp.bfloat16),
                   preferred_element_type=jnp.float32) + b2
    f = jnp.maximum(f, 0.0)
    return jnp.max(f, axis=1).reshape(B, T, -1)


if __name__ == "__main__":
    # Small deterministic shapes consistent with the module defaults.
    B, T, N = 2, 3, 8
    input_dim, hidden_dim, feature_dim = 5, 64, 128

    key = jax.random.PRNGKey(0)
    kx, k1, k2, k3, k4 = jax.random.split(key, 5)

    x = jax.random.normal(kx, (B, T, N, input_dim), dtype=jnp.float32)

    bound1 = 1.0 / input_dim ** 0.5
    bound2 = 1.0 / hidden_dim ** 0.5
    w1 = jax.random.uniform(k1, (input_dim, hidden_dim), jnp.float32, -bound1, bound1)
    b1 = jax.random.uniform(k2, (hidden_dim,), jnp.float32, -bound1, bound1)
    w2 = jax.random.uniform(k3, (hidden_dim, feature_dim), jnp.float32, -bound2, bound2)
    b2 = jax.random.uniform(k4, (feature_dim,), jnp.float32, -bound2, bound2)

    out = jax.block_until_ready(radar_encoder(x, w1, b1, w2, b2))
    assert out.shape == (B, T, feature_dim), out.shape

    ref_match = radar_encoder_ref_bf16(x, w1, b1, w2, b2)   # same operand dtypes
    ref_f32 = radar_encoder_ref(x, w1, b1, w2, b2)          # original f32 semantics
    assert jnp.allclose(out, ref_match, atol=2e-3, rtol=2e-3), \
        "mismatch vs matched-precision reference"
    assert jnp.allclose(out, ref_f32, atol=5e-2, rtol=5e-2), \
        "mismatch vs f32 reference (beyond bf16 rounding)"

    print("KERNEL_OK")
</pallas_src>

<mosaic_0001>
module attributes {stable_mosaic.version = 11 : i64} {
  func.func @kernel(%arg0: i32, %arg1: memref<8x40xbf16, #tpu.memory_space<vmem>>, %arg2: memref<40x512xbf16, #tpu.memory_space<vmem>>, %arg3: memref<1x512xf32, #tpu.memory_space<vmem>>, %arg4: memref<128x256xbf16, #tpu.memory_space<vmem>>, %arg5: memref<1x256xf32, #tpu.memory_space<vmem>>, %arg6: memref<8x128xf32, #tpu.memory_space<vmem>>) attributes {dimension_semantics = [#tpu.dimension_semantics<parallel>], iteration_bounds = array<i64: 1>, scalar_prefetch = 0 : i64, scratch_operands = 0 : i64, tpu.core_type = #tpu.core_type<tc>, window_params = [{transform_indices = @transform_0, window_bounds = array<i64: 8, 40>}, {pipeline_mode = #tpu.pipeline_mode<synchronous>, transform_indices = @transform_1, window_bounds = array<i64: 40, 512>}, {pipeline_mode = #tpu.pipeline_mode<synchronous>, transform_indices = @transform_2, window_bounds = array<i64: 1, 512>}, {pipeline_mode = #tpu.pipeline_mode<synchronous>, transform_indices = @transform_3, window_bounds = array<i64: 128, 256>}, {pipeline_mode = #tpu.pipeline_mode<synchronous>, transform_indices = @transform_4, window_bounds = array<i64: 1, 256>}, {transform_indices = @transform_5, window_bounds = array<i64: 8, 128>}]} {
    %c0 = arith.constant 0 : index
    %c0_0 = arith.constant 0 : index
    %0 = vector.load %arg1[%c0, %c0_0] : memref<8x40xbf16, #tpu.memory_space<vmem>>, vector<8x40xbf16>
    %c0_1 = arith.constant 0 : index
    %c0_2 = arith.constant 0 : index
    %1 = vector.load %arg2[%c0_1, %c0_2] : memref<40x512xbf16, #tpu.memory_space<vmem>>, vector<40x512xbf16>
    %cst = arith.constant dense<0.000000e+00> : vector<8x512xf32>
    %2 = tpu.matmul %0, %1, %cst {dimension_numbers = #tpu.dot_dimension_numbers<[1], [0], [0], [1], [0, 0, 1, 1], [], []>} : vector<8x40xbf16>, vector<40x512xbf16>, vector<8x512xf32> -> vector<8x512xf32>
    %c0_3 = arith.constant 0 : index
    %c0_4 = arith.constant 0 : index
    %3 = vector.load %arg3[%c0_3, %c0_4] : memref<1x512xf32, #tpu.memory_space<vmem>>, vector<1x512xf32>
    %4 = vector.broadcast %3 : vector<1x512xf32> to vector<8x512xf32>
    %5 = arith.addf %2, %4 : vector<8x512xf32>
    %cst_5 = arith.constant 0.000000e+00 : f32
    %6 = vector.broadcast %cst_5 : f32 to vector<8x512xf32>
    %7 = arith.maximumf %5, %6 : vector<8x512xf32>
    %8 = arith.truncf %7 : vector<8x512xf32> to vector<8x512xbf16>
    %cst_6 = arith.constant 0.000000e+00 : f32
    %9 = vector.broadcast %cst_6 : f32 to vector<8x128xf32>
    %10 = vector.extract_strided_slice %8 {offsets = [0, 0], sizes = [8, 128], strides = [1, 1]} : vector<8x512xbf16> to vector<8x128xbf16>
    %c0_7 = arith.constant 0 : index
    %c0_8 = arith.constant 0 : index
    %11 = vector.load %arg4[%c0_7, %c0_8] : memref<128x256xbf16, #tpu.memory_space<vmem>>, vector<128x256xbf16>
    %cst_9 = arith.constant dense<0.000000e+00> : vector<8x256xf32>
    %12 = tpu.matmul %10, %11, %cst_9 {dimension_numbers = #tpu.dot_dimension_numbers<[1], [0], [0], [1], [0, 0, 1, 1], [], []>} : vector<8x128xbf16>, vector<128x256xbf16>, vector<8x256xf32> -> vector<8x256xf32>
    %c0_10 = arith.constant 0 : index
    %c0_11 = arith.constant 0 : index
    %13 = vector.load %arg5[%c0_10, %c0_11] : memref<1x256xf32, #tpu.memory_space<vmem>>, vector<1x256xf32>
    %14 = vector.broadcast %13 : vector<1x256xf32> to vector<8x256xf32>
    %15 = arith.addf %12, %14 : vector<8x256xf32>
    %cst_12 = arith.constant 0.000000e+00 : f32
    %16 = vector.broadcast %cst_12 : f32 to vector<8x256xf32>
    %17 = arith.maximumf %15, %16 : vector<8x256xf32>
    %18 = vector.extract_strided_slice %17 {offsets = [0, 0], sizes = [8, 128], strides = [1, 1]} : vector<8x256xf32> to vector<8x128xf32>
    %19 = vector.extract_strided_slice %17 {offsets = [0, 128], sizes = [8, 128], strides = [1, 1]} : vector<8x256xf32> to vector<8x128xf32>
    %20 = arith.maximumf %18, %19 : vector<8x128xf32>
    %21 = arith.maximumf %9, %20 : vector<8x128xf32>
    %22 = vector.extract_strided_slice %8 {offsets = [0, 128], sizes = [8, 128], strides = [1, 1]} : vector<8x512xbf16> to vector<8x128xbf16>
    %c0_13 = arith.constant 0 : index
    %c0_14 = arith.constant 0 : index
    %23 = vector.load %arg4[%c0_13, %c0_14] : memref<128x256xbf16, #tpu.memory_space<vmem>>, vector<128x256xbf16>
    %cst_15 = arith.constant dense<0.000000e+00> : vector<8x256xf32>
    %24 = tpu.matmul %22, %23, %cst_15 {dimension_numbers = #tpu.dot_dimension_numbers<[1], [0], [0], [1], [0, 0, 1, 1], [], []>} : vector<8x128xbf16>, vector<128x256xbf16>, vector<8x256xf32> -> vector<8x256xf32>
    %c0_16 = arith.constant 0 : index
    %c0_17 = arith.constant 0 : index
    %25 = vector.load %arg5[%c0_16, %c0_17] : memref<1x256xf32, #tpu.memory_space<vmem>>, vector<1x256xf32>
    %26 = vector.broadcast %25 : vector<1x256xf32> to vector<8x256xf32>
    %27 = arith.addf %24, %26 : vector<8x256xf32>
    %cst_18 = arith.constant 0.000000e+00 : f32
    %28 = vector.broadcast %cst_18 : f32 to vector<8x256xf32>
    %29 = arith.maximumf %27, %28 : vector<8x256xf32>
    %30 = vector.extract_strided_slice %29 {offsets = [0, 0], sizes = [8, 128], strides = [1, 1]} : vector<8x256xf32> to vector<8x128xf32>
    %31 = vector.extract_strided_slice %29 {offsets = [0, 128], sizes = [8, 128], strides = [1, 1]} : vector<8x256xf32> to vector<8x128xf32>
    %32 = arith.maximumf %30, %31 : vector<8x128xf32>
    %33 = arith.maximumf %21, %32 : vector<8x128xf32>
    %34 = vector.extract_strided_slice %8 {offsets = [0, 256], sizes = [8, 128], strides = [1, 1]} : vector<8x512xbf16> to vector<8x128xbf16>
    %c0_19 = arith.constant 0 : index
    %c0_20 = arith.constant 0 : index
    %35 = vector.load %arg4[%c0_19, %c0_20] : memref<128x256xbf16, #tpu.memory_space<vmem>>, vector<128x256xbf16>
    %cst_21 = arith.constant dense<0.000000e+00> : vector<8x256xf32>
    %36 = tpu.matmul %34, %35, %cst_21 {dimension_numbers = #tpu.dot_dimension_numbers<[1], [0], [0], [1], [0, 0, 1, 1], [], []>} : vector<8x128xbf16>, vector<128x256xbf16>, vector<8x256xf32> -> vector<8x256xf32>
    %c0_22 = arith.constant 0 : index
    %c0_23 = arith.constant 0 : index
    %37 = vector.load %arg5[%c0_22, %c0_23] : memref<1x256xf32, #tpu.memory_space<vmem>>, vector<1x256xf32>
    %38 = vector.broadcast %37 : vector<1x256xf32> to vector<8x256xf32>
    %39 = arith.addf %36, %38 : vector<8x256xf32>
    %cst_24 = arith.constant 0.000000e+00 : f32
    %40 = vector.broadcast %cst_24 : f32 to vector<8x256xf32>
    %41 = arith.maximumf %39, %40 : vector<8x256xf32>
    %42 = vector.extract_strided_slice %41 {offsets = [0, 0], sizes = [8, 128], strides = [1, 1]} : vector<8x256xf32> to vector<8x128xf32>
    %43 = vector.extract_strided_slice %41 {offsets = [0, 128], sizes = [8, 128], strides = [1, 1]} : vector<8x256xf32> to vector<8x128xf32>
    %44 = arith.maximumf %42, %43 : vector<8x128xf32>
    %45 = arith.maximumf %33, %44 : vector<8x128xf32>
    %46 = vector.extract_strided_slice %8 {offsets = [0, 384], sizes = [8, 128], strides = [1, 1]} : vector<8x512xbf16> to vector<8x128xbf16>
    %c0_25 = arith.constant 0 : index
    %c0_26 = arith.constant 0 : index
    %47 = vector.load %arg4[%c0_25, %c0_26] : memref<128x256xbf16, #tpu.memory_space<vmem>>, vector<128x256xbf16>
    %cst_27 = arith.constant dense<0.000000e+00> : vector<8x256xf32>
    %48 = tpu.matmul %46, %47, %cst_27 {dimension_numbers = #tpu.dot_dimension_numbers<[1], [0], [0], [1], [0, 0, 1, 1], [], []>} : vector<8x128xbf16>, vector<128x256xbf16>, vector<8x256xf32> -> vector<8x256xf32>
    %c0_28 = arith.constant 0 : index
    %c0_29 = arith.constant 0 : index
    %49 = vector.load %arg5[%c0_28, %c0_29] : memref<1x256xf32, #tpu.memory_space<vmem>>, vector<1x256xf32>
    %50 = vector.broadcast %49 : vector<1x256xf32> to vector<8x256xf32>
    %51 = arith.addf %48, %50 : vector<8x256xf32>
    %cst_30 = arith.constant 0.000000e+00 : f32
    %52 = vector.broadcast %cst_30 : f32 to vector<8x256xf32>
    %53 = arith.maximumf %51, %52 : vector<8x256xf32>
    %54 = vector.extract_strided_slice %53 {offsets = [0, 0], sizes = [8, 128], strides = [1, 1]} : vector<8x256xf32> to vector<8x128xf32>
    %55 = vector.extract_strided_slice %53 {offsets = [0, 128], sizes = [8, 128], strides = [1, 1]} : vector<8x256xf32> to vector<8x128xf32>
    %56 = arith.maximumf %54, %55 : vector<8x128xf32>
    %57 = arith.maximumf %45, %56 : vector<8x128xf32>
    %c0_31 = arith.constant 0 : index
    %c0_32 = arith.constant 0 : index
    %58 = vector.load %arg6[%c0_31, %c0_32] : memref<8x128xf32, #tpu.memory_space<vmem>>, vector<8x128xf32>
    tpu.vector_store %arg6[%c0_31, %c0_32], %57 {strides = array<i32>} : memref<8x128xf32, #tpu.memory_space<vmem>>, vector<8x128xf32>,
    return
  }
  func.func @transform_0(%arg0: i32) -> (i32, i32) {
    %c0_i32 = arith.constant 0 : i32
    %c0_i32_0 = arith.constant 0 : i32
    return %arg0, %c0_i32 : i32, i32
  }
  func.func @transform_1(%arg0: i32) -> (i32, i32) {
    %c0_i32 = arith.constant 0 : i32
    %c0_i32_0 = arith.constant 0 : i32
    %c0_i32_1 = arith.constant 0 : i32
    return %c0_i32, %c0_i32_0 : i32, i32
  }
  func.func @transform_2(%arg0: i32) -> (i32, i32) {
    %c0_i32 = arith.constant 0 : i32
    %c0_i32_0 = arith.constant 0 : i32
    %c0_i32_1 = arith.constant 0 : i32
    return %c0_i32, %c0_i32_0 : i32, i32
  }
  func.func @transform_3(%arg0: i32) -> (i32, i32) {
    %c0_i32 = arith.constant 0 : i32
    %c0_i32_0 = arith.constant 0 : i32
    %c0_i32_1 = arith.constant 0 : i32
    return %c0_i32, %c0_i32_0 : i32, i32
  }
  func.func @transform_4(%arg0: i32) -> (i32, i32) {
    %c0_i32 = arith.constant 0 : i32
    %c0_i32_0 = arith.constant 0 : i32
    %c0_i32_1 = arith.constant 0 : i32
    return %c0_i32, %c0_i32_0 : i32, i32
  }
  func.func @transform_5(%arg0: i32) -> (i32, i32) {
    %c0_i32 = arith.constant 0 : i32
    %c0_i32_0 = arith.constant 0 : i32
    return %arg0, %c0_i32 : i32, i32
  }
}

</mosaic_0001>

<llo_original>
// kernel: tpu_custom_call.1
$region0: #{tpu_custom_call.1}
  #allocation0 [shape = 'u32[]', space=smem, size = 0x4, offset = 0x4, fixed_abs, tag = 'smem constant byte address 0x4 - core index']
  #allocation1 [shape = 'u32[144,128]{1,0:T(1,128)}', space=vmem, size = 0x12000, scoped, tag = 'internal scratch']
  %s0 = inlined_call_operand.hbm [shape: bf16[8,40], index: 0, kind: input, shape index: {}]
  %s1 = inlined_call_operand.hbm [shape: bf16[40,512], index: 1, kind: input, shape index: {}]
  %s2 = inlined_call_operand.hbm [shape: f32[1,512], index: 2, kind: input, shape index: {}]
  %s3 = inlined_call_operand.hbm [shape: bf16[128,256], index: 3, kind: input, shape index: {}]
  %s4 = inlined_call_operand.vmem [shape: f32[1,256], index: 4, kind: input, shape index: {}]
  %s5 = inlined_call_operand.hbm [shape: f32[8,128], index: 5, kind: output, shape index: {}]
  %s6 = sld [smem:[#allocation0]]
  $region46: #{tpu_custom_call.1} parent=0
    _
  %s8 = ssub.s32 1, %s6
  %s9 = scalar_select 0, %s8, %s6
  $region1: #{tpu_custom_call.1} parent=0
    #allocation2 [shape = 'u8[2048]{0}', space=vmem, size = 0x800, scoped, tag = 'input window, operand 0, single buffered']
    #allocation3 [shape = 's32[1]{0}', space=sflag, size = 0x4, scoped, tag = 'scoped memory for tpu_custom_call.1']
    #allocation4 [shape = 's32[1]{0}', space=sflag, size = 0x4, scoped, tag = 'scoped memory for tpu_custom_call.1']
    #allocation5 [shape = 'u8[40960]{0}', space=vmem, size = 0xa000, scoped, tag = 'input window, operand 1, single buffered']
    #allocation6 [shape = 's32[1]{0}', space=sflag, size = 0x4, scoped, tag = 'scoped memory for tpu_custom_call.1']
    #allocation7 [shape = 'u8[2048]{0}', space=vmem, size = 0x800, scoped, tag = 'input window, operand 2, single buffered']
    #allocation8 [shape = 'u8[65536]{0}', space=vmem, size = 0x10000, scoped, tag = 'input window, operand 3, single buffered']
    #allocation9 [shape = 's32[1]{0}', space=sflag, size = 0x4, scoped, tag = 'scoped memory for tpu_custom_call.1']
    #allocation10 [shape = 'u8[4096]{0}', space=vmem, size = 0x1000, scoped, tag = 'output window, operand 0, single buffered']
    %10 = vsyncpa [#allocation3], 0
    %11 = vsyncpa [#allocation6], 0
    %12 = vsyncpa [#allocation9], 0
    %13 = vsyncpa [#allocation4], 0
    // Predicated region
    $region2: #{tpu_custom_call.1} parent=1 // pred_check
      _
    $region3: #{tpu_custom_call.1} parent=1 // pred_check_branch
      %15 = sbr.rel (0) target = $region5
    $region4: #{tpu_custom_call.1} parent=1 // pred_region
      %s17 = ssub.s32 64, 64
      %18 = vsyncadd [#allocation3], %s17
      %s20 = sshll.u32 [#allocation2], 4
      %s21 = int_to_ptr.vmem [resolvable:$true] %s20
      %23 = dma.hbm_to_vmem [thread:$0]  %s0, 64, %s21, [#allocation3]
    $region5: #{tpu_custom_call.1} parent=1 // pred_fallthru
      _
    // Predicated region
    $region6: #{tpu_custom_call.1} parent=1 // pred_check
      _
    $region7: #{tpu_custom_call.1} parent=1 // pred_check_branch
      %25 = sbr.rel (0) target = $region9
    $region8: #{tpu_custom_call.1} parent=1 // pred_region
      %s27 = ssub.s32 1280, 1280
      %28 = vsyncadd [#allocation6], %s27
      %s29 = sshll.u32 [#allocation5], 4
      %s30 = int_to_ptr.vmem [resolvable:$true] %s29
      %35 = dma.hbm_to_vmem [thread:$0]  %s1, 1280, %s30, [#allocation6], 256, 256, 16
    $region9: #{tpu_custom_call.1} parent=1 // pred_fallthru
      _
    // Predicated region
    $region10: #{tpu_custom_call.1} parent=1 // pred_check
      _
    $region11: #{tpu_custom_call.1} parent=1 // pred_check_branch
      %37 = sbr.rel (0) target = $region13
    $region12: #{tpu_custom_call.1} parent=1 // pred_region
      %s39 = ssub.s32 64, 64
      %40 = vsyncadd [#allocation6], %s39
      %s42 = sshll.u32 [#allocation7], 4
      %s43 = int_to_ptr.vmem [resolvable:$true] %s42
      %45 = dma.hbm_to_vmem [thread:$0]  %s2, 64, %s43, [#allocation6]
    $region13: #{tpu_custom_call.1} parent=1 // pred_fallthru
      _
    // Predicated region
    $region14: #{tpu_custom_call.1} parent=1 // pred_check
      _
    $region15: #{tpu_custom_call.1} parent=1 // pred_check_branch
      %47 = sbr.rel (0) target = $region17
    $region16: #{tpu_custom_call.1} parent=1 // pred_region
      %s49 = ssub.s32 2048, 2048
      %50 = vsyncadd [#allocation9], %s49
      %s51 = sshll.u32 [#allocation8], 4
      %s52 = int_to_ptr.vmem [resolvable:$true] %s51
      %57 = dma.hbm_to_vmem [thread:$0]  %s3, 2048, %s52, [#allocation9], 128, 128, 8
    $region17: #{tpu_custom_call.1} parent=1 // pred_fallthru
      _
    // Predicated region
    $region18: #{tpu_custom_call.1} parent=1 // pred_check
      _
    $region19: #{tpu_custom_call.1} parent=1 // pred_check_branch
      %59 = sbr.rel (0) target = $region21
    $region20: #{tpu_custom_call.1} parent=1 // pred_region
      _
    $region21: #{tpu_custom_call.1} parent=1 // pred_fallthru
      _
    // Predicated region
    $region22: #{tpu_custom_call.1} parent=1 // pred_check
      _
    $region23: #{tpu_custom_call.1} parent=1 // pred_check_branch
      %61 = sbr.rel (0) target = $region25
    $region24: #{tpu_custom_call.1} parent=1 // pred_region
      %62 = dma.done [#allocation3], 64
    $region25: #{tpu_custom_call.1} parent=1 // pred_fallthru
      _
    // Predicated region
    $region26: #{tpu_custom_call.1} parent=1 // pred_check
      _
    $region27: #{tpu_custom_call.1} parent=1 // pred_check_branch
      %64 = sbr.rel (0) target = $region29
    $region28: #{tpu_custom_call.1} parent=1 // pred_region
      %65 = dma.done [#allocation6], 1280
    $region29: #{tpu_custom_call.1} parent=1 // pred_fallthru
      _
    // Predicated region
    $region30: #{tpu_custom_call.1} parent=1 // pred_check
      _
    $region31: #{tpu_custom_call.1} parent=1 // pred_check_branch
      %67 = sbr.rel (0) target = $region33
    $region32: #{tpu_custom_call.1} parent=1 // pred_region
      %68 = dma.done [#allocation6], 64
    $region33: #{tpu_custom_call.1} parent=1 // pred_fallthru
      _
    // Predicated region
    $region34: #{tpu_custom_call.1} parent=1 // pred_check
      _
    $region35: #{tpu_custom_call.1} parent=1 // pred_check_branch
      %70 = sbr.rel (0) target = $region37
    $region36: #{tpu_custom_call.1} parent=1 // pred_region
      %71 = dma.done [#allocation9], 2048
    $region37: #{tpu_custom_call.1} parent=1 // pred_fallthru
      _
    %v73 = vld [vmem:[#allocation2] sm:$0xf]
    %v74 = vld [vmem:[#allocation5] sm:$0xff]
    %v75 = vld [vmem:[#allocation5 + $0x8] sm:$0xff]
    %v76 = vld [vmem:[#allocation5 + $0x10] sm:$0xff]
    %v77 = vld [vmem:[#allocation5 + $0x18] sm:$0xff]
    %v78 = vld [vmem:[#allocation5 + $0x20] sm:$0xff]
    %v79 = vld [vmem:[#allocation5 + $0x28] sm:$0xff]
    %v80 = vld [vmem:[#allocation5 + $0x30] sm:$0xff]
    %v81 = vld [vmem:[#allocation5 + $0x38] sm:$0xff]
    %v82 = vld [vmem:[#allocation5 + $0x40] sm:$0xff]
    %v83 = vld [vmem:[#allocation5 + $0x48] sm:$0xff]
    %v84 = vld [vmem:[#allocation7] sm:$0xf]
    %v86 = vlaneseq
    %v87 = vshrl.u32 %v86, 7
    %v88 = vsub.s32 0, %v87
    %v89 = vrot.slane %v84, %v88
    %v90 = vlaneseq
    %v91 = vshrl.u32 %v90, 7
    %v92 = vsub.s32 1, %v91
    %v93 = vrot.slane %v84, %v92
    %v94 = vlaneseq
    %v95 = vshrl.u32 %v94, 7
    %v96 = vsub.s32 2, %v95
    %v97 = vrot.slane %v84, %v96
    %v98 = vlaneseq
    %v99 = vshrl.u32 %v98, 7
    %v100 = vsub.s32 3, %v99
    %v101 = vrot.slane %v84, %v100
    %v116 = vunpack.c.l.b16 %v74
    %v117 = vunpack.c.h.b16 %v74
    %v118 = vunpack.c.l.b16 %v75
    %v119 = vunpack.c.h.b16 %v75
    %v120 = vunpack.c.l.b16 %v76
    %v121 = vunpack.c.h.b16 %v76
    %v122 = vunpack.c.l.b16 %v77
    %v123 = vunpack.c.h.b16 %v77
    %v124 = vunpack.c.l.b16 %v78
    %v125 = vunpack.c.h.b16 %v78
    %v126 = vunpack.c.l.b16 %v79
    %v127 = vunpack.c.h.b16 %v79
    %v128 = vunpack.c.l.b16 %v80
    %v129 = vunpack.c.h.b16 %v80
    %v130 = vunpack.c.l.b16 %v81
    %v131 = vunpack.c.h.b16 %v81
    %v132 = vunpack.c.l.b16 %v82
    %v133 = vunpack.c.h.b16 %v82
    %v134 = vunpack.c.l.b16 %v83
    %v135 = vunpack.c.h.b16 %v83
    %v136 = vpack.c.b16 %v120, %v116
    %v137 = vpack.c.b16 %v121, %v117
    %v138 = vpack.c.b16 %v122, %v118
    %v139 = vpack.c.b16 %v123, %v119
    %v140 = vpack.c.b16 %v128, %v124
    %v141 = vpack.c.b16 %v129, %v125
    %v142 = vpack.c.b16 %v130, %v126
    %v143 = vpack.c.b16 %v131, %v127
    %v144 = vpack.c.b16 %v132, %v132
    %v145 = vpack.c.b16 %v133, %v133
    %v146 = vpack.c.b16 %v134, %v134
    %v147 = vpack.c.b16 %v135, %v135
    %vm156 = vcmask 326656
    %v158 = vsel %vm156, %v73, 0
    %vm160 = vcmask 1043456
    %v162 = vsel %vm160, %v144, 0
    %v165 = vsel %vm160, %v145, 0
    %v168 = vsel %vm160, %v146, 0
    %v171 = vsel %vm160, %v147, 0
    %173 = vmatprep.subr.bf16.mxu0 0
    %174 = vmatpush1.bf16.msra.mxu0 0
    %175 = vmatprep.subr.bf16.mxu0 0
    %176 = vmatpush1.bf16.msra.mxu0 0
    %177 = vmatprep.subr.bf16.mxu0 0
    %178 = vmatpush1.bf16.msra.mxu0 0
    %179 = vmatprep.subr.bf16.mxu0 0
    %180 = vmatpush1.bf16.msra.mxu0 0
    %181 = vmatprep.subr.bf16.mxu0 0
    %182 = vmatpush1.bf16.msra.mxu0 0
    %183 = vmatprep.subr.bf16.mxu0 %v165
    %184 = vmatpush1.bf16.msra.mxu0 %v162
    %185 = vmatprep.subr.bf16.mxu0 %v141
    %186 = vmatpush1.bf16.msra.mxu0 %v140
    %187 = vmatprep.subr.bf16.mxu0 %v137
    %188 = vmatpush1.bf16.msra.mxu0 %v136
    %189 = vmatprep.subr.bf16.mxu0 0
    %190 = vmatpush2.bf16.msra.mxu0 0
    %191 = vmatprep.subr.bf16.mxu0 0
    %192 = vmatpush2.bf16.msra.mxu0 0
    %193 = vmatprep.subr.bf16.mxu0 0
    %194 = vmatpush2.bf16.msra.mxu0 0
    %195 = vmatprep.subr.bf16.mxu0 0
    %196 = vmatpush2.bf16.msra.mxu0 0
    %197 = vmatprep.subr.bf16.mxu0 0
    %198 = vmatpush2.bf16.msra.mxu0 0
    %199 = vmatprep.subr.bf16.mxu0 0
    %200 = vmatpush2.bf16.msra.mxu0 0
    %201 = vmatprep.subr.bf16.mxu0 0
    %202 = vmatpush2.bf16.msra.mxu0 0
    %203 = vmatprep.subr.bf16.mxu0 0
    %204 = vmatpush2.bf16.msra.mxu0 0
    %205 = vmatprep.mubr.bf16.mxu0 0
    %206 = vmatmul.mubr.bf16.gmra.mxu0 %v158
    %v207 = vpop.f32.mrf.mxu0
    %v208 = vadd.f32 %v89, %v207
    %v209 = vpop.f32.mrf.mxu0
    %v210 = vadd.f32 %v93, %v209
    %v211 = vpop.f32.mrf.mxu0
    %v212 = vpop.f32.mrf.mxu0
    %213 = vdwg.mxu0
    %214 = vmatprep.subr.bf16.mxu0 0
    %215 = vmatpush1.bf16.msra.mxu0 0
    %216 = vmatprep.subr.bf16.mxu0 0
    %217 = vmatpush1.bf16.msra.mxu0 0
    %218 = vmatprep.subr.bf16.mxu0 0
    %219 = vmatpush1.bf16.msra.mxu0 0
    %220 = vmatprep.subr.bf16.mxu0 0
    %221 = vmatpush1.bf16.msra.mxu0 0
    %222 = vmatprep.subr.bf16.mxu0 0
    %223 = vmatpush1.bf16.msra.mxu0 0
    %224 = vmatprep.subr.bf16.mxu0 %v171
    %225 = vmatpush1.bf16.msra.mxu0 %v168
    %226 = vmatprep.subr.bf16.mxu0 %v143
    %227 = vmatpush1.bf16.msra.mxu0 %v142
    %228 = vmatprep.subr.bf16.mxu0 %v139
    %229 = vmatpush1.bf16.msra.mxu0 %v138
    %230 = vmatprep.subr.bf16.mxu0 0
    %231 = vmatpush2.bf16.msra.mxu0 0
    %232 = vmatprep.subr.bf16.mxu0 0
    %233 = vmatpush2.bf16.msra.mxu0 0
    %234 = vmatprep.subr.bf16.mxu0 0
    %235 = vmatpush2.bf16.msra.mxu0 0
    %236 = vmatprep.subr.bf16.mxu0 0
    %237 = vmatpush2.bf16.msra.mxu0 0
    %238 = vmatprep.subr.bf16.mxu0 0
    %239 = vmatpush2.bf16.msra.mxu0 0
    %240 = vmatprep.subr.bf16.mxu0 0
    %241 = vmatpush2.bf16.msra.mxu0 0
    %242 = vmatprep.subr.bf16.mxu0 0
    %243 = vmatpush2.bf16.msra.mxu0 0
    %244 = vmatprep.subr.bf16.mxu0 0
    %245 = vmatpush2.bf16.msra.mxu0 0
    %246 = vmatprep.mubr.bf16.mxu0 0
    %247 = vmatmul.mubr.bf16.gmra.mxu0 %v158
    %v248 = vpop.f32.mrf.mxu0
    %v249 = vadd.f32 %v97, %v248
    %v250 = vpop.f32.mrf.mxu0
    %v251 = vadd.f32 %v101, %v250
    %v252 = vpop.f32.mrf.mxu0
    %v253 = vpop.f32.mrf.mxu0
    %254 = vdwg.mxu0
    %v255 = vmax.f32 %v208, 0.0
    %v256 = vmax.f32 %v210, 0.0
    %v257 = vmax.f32 %v249, 0.0
    %v258 = vmax.f32 %v251, 0.0
    %v259 = vpack.c.bf16 %v255, %v255
    %v260 = vpack.c.bf16 %v256, %v256
    %v261 = vpack.c.bf16 %v257, %v257
    %v262 = vpack.c.bf16 %v258, %v258
    %v263 = vld [vmem:[#allocation8] sm:$0xff]
    %v264 = vld [vmem:[#allocation8 + $0x8] sm:$0xff]
    %v265 = vld [vmem:[#allocation8 + $0x10] sm:$0xff]
    %v266 = vld [vmem:[#allocation8 + $0x18] sm:$0xff]
    %v267 = vld [vmem:[#allocation8 + $0x20] sm:$0xff]
    %v268 = vld [vmem:[#allocation8 + $0x28] sm:$0xff]
    %v269 = vld [vmem:[#allocation8 + $0x30] sm:$0xff]
    %v270 = vld [vmem:[#allocation8 + $0x38] sm:$0xff]
    %v271 = vld [vmem:[#allocation8 + $0x40] sm:$0xff]
    %v272 = vld [vmem:[#allocation8 + $0x48] sm:$0xff]
    %v273 = vld [vmem:[#allocation8 + $0x50] sm:$0xff]
    %v274 = vld [vmem:[#allocation8 + $0x58] sm:$0xff]
    %v275 = vld [vmem:[#allocation8 + $0x60] sm:$0xff]
    %v276 = vld [vmem:[#allocation8 + $0x68] sm:$0xff]
    %v277 = vld [vmem:[#allocation8 + $0x70] sm:$0xff]
    %v278 = vld [vmem:[#allocation8 + $0x78] sm:$0xff]
    %v279 = vld [vmem:[%s4] sm:$0x3]
    %v281 = vlaneseq
    %v282 = vshrl.u32 %v281, 7
    %v283 = vsub.s32 0, %v282
    %v284 = vrot.slane %v279, %v283
    %v285 = vlaneseq
    %v286 = vshrl.u32 %v285, 7
    %v287 = vsub.s32 1, %v286
    %v288 = vrot.slane %v279, %v287
    %v307 = vunpack.c.l.b16 %v263
    %v308 = vunpack.c.h.b16 %v263
    %v309 = vunpack.c.l.b16 %v264
    %v310 = vunpack.c.h.b16 %v264
    %v311 = vunpack.c.l.b16 %v265
    %v312 = vunpack.c.h.b16 %v265
    %v313 = vunpack.c.l.b16 %v266
    %v314 = vunpack.c.h.b16 %v266
    %v315 = vunpack.c.l.b16 %v267
    %v316 = vunpack.c.h.b16 %v267
    %v317 = vunpack.c.l.b16 %v268
    %v318 = vunpack.c.h.b16 %v268
    %v319 = vunpack.c.l.b16 %v269
    %v320 = vunpack.c.h.b16 %v269
    %v321 = vunpack.c.l.b16 %v270
    %v322 = vunpack.c.h.b16 %v270
    %v323 = vunpack.c.l.b16 %v271
    %v324 = vunpack.c.h.b16 %v271
    %v325 = vunpack.c.l.b16 %v272
    %v326 = vunpack.c.h.b16 %v272
    %v327 = vunpack.c.l.b16 %v273
    %v328 = vunpack.c.h.b16 %v273
    %v329 = vunpack.c.l.b16 %v274
    %v330 = vunpack.c.h.b16 %v274
    %v331 = vunpack.c.l.b16 %v275
    %v332 = vunpack.c.h.b16 %v275
    %v333 = vunpack.c.l.b16 %v276
    %v334 = vunpack.c.h.b16 %v276
    %v335 = vunpack.c.l.b16 %v277
    %v336 = vunpack.c.h.b16 %v277
    %v337 = vunpack.c.l.b16 %v278
    %v338 = vunpack.c.h.b16 %v278
    %v339 = vpack.c.b16 %v309, %v307
    %v340 = vpack.c.b16 %v310, %v308
    %v341 = vpack.c.b16 %v313, %v311
    %v342 = vpack.c.b16 %v314, %v312
    %v343 = vpack.c.b16 %v317, %v315
    %v344 = vpack.c.b16 %v318, %v316
    %v345 = vpack.c.b16 %v321, %v319
    %v346 = vpack.c.b16 %v322, %v320
    %v347 = vpack.c.b16 %v325, %v323
    %v348 = vpack.c.b16 %v326, %v324
    %v349 = vpack.c.b16 %v329, %v327
    %v350 = vpack.c.b16 %v330, %v328
    %v351 = vpack.c.b16 %v333, %v331
    %v352 = vpack.c.b16 %v334, %v332
    %v353 = vpack.c.b16 %v337, %v335
    %v354 = vpack.c.b16 %v338, %v336
    %371 = vmatprep.subr.bf16.mxu0 %v354
    %372 = vmatpush1.bf16.msra.mxu0 %v353
    %373 = vmatprep.subr.bf16.mxu0 %v352
    %374 = vmatpush1.bf16.msra.mxu0 %v351
    %375 = vmatprep.subr.bf16.mxu0 %v350
    %376 = vmatpush1.bf16.msra.mxu0 %v349
    %377 = vmatprep.subr.bf16.mxu0 %v348
    %378 = vmatpush1.bf16.msra.mxu0 %v347
    %379 = vmatprep.subr.bf16.mxu0 %v346
    %380 = vmatpush1.bf16.msra.mxu0 %v345
    %381 = vmatprep.subr.bf16.mxu0 %v344
    %382 = vmatpush1.bf16.msra.mxu0 %v343
    %383 = vmatprep.subr.bf16.mxu0 %v342
    %384 = vmatpush1.bf16.msra.mxu0 %v341
    %385 = vmatprep.subr.bf16.mxu0 %v340
    %386 = vmatpush1.bf16.msra.mxu0 %v339
    %387 = vmatprep.subr.bf16.mxu0 0
    %388 = vmatpush2.bf16.msra.mxu0 0
    %389 = vmatprep.subr.bf16.mxu0 0
    %390 = vmatpush2.bf16.msra.mxu0 0
    %391 = vmatprep.subr.bf16.mxu0 0
    %392 = vmatpush2.bf16.msra.mxu0 0
    %393 = vmatprep.subr.bf16.mxu0 0
    %394 = vmatpush2.bf16.msra.mxu0 0
    %395 = vmatprep.subr.bf16.mxu0 0
    %396 = vmatpush2.bf16.msra.mxu0 0
    %397 = vmatprep.subr.bf16.mxu0 0
    %398 = vmatpush2.bf16.msra.mxu0 0
    %399 = vmatprep.subr.bf16.mxu0 0
    %400 = vmatpush2.bf16.msra.mxu0 0
    %401 = vmatprep.subr.bf16.mxu0 0
    %402 = vmatpush2.bf16.msra.mxu0 0
    %403 = vmatprep.mubr.bf16.mxu0 0
    %404 = vmatmul.mubr.bf16.gmra.mxu0 %v259
    %v405 = vpop.f32.mrf.mxu0
    %v406 = vadd.f32 %v284, %v405
    %v407 = vpop.f32.mrf.mxu0
    %v408 = vadd.f32 %v288, %v407
    %v409 = vpop.f32.mrf.mxu0
    %v410 = vpop.f32.mrf.mxu0
    %411 = vdwg.mxu0
    %v412 = vmax.f32 %v406, 0.0
    %v413 = vmax.f32 %v408, 0.0
    %v414 = vmax.f32 %v412, %v413
    %v415 = vmax.f32 %v414, 0.0
    %416 = vmatprep.subr.bf16.mxu0 %v354
    %417 = vmatpush1.bf16.msra.mxu0 %v353
    %418 = vmatprep.subr.bf16.mxu0 %v352
    %419 = vmatpush1.bf16.msra.mxu0 %v351
    %420 = vmatprep.subr.bf16.mxu0 %v350
    %421 = vmatpush1.bf16.msra.mxu0 %v349
    %422 = vmatprep.subr.bf16.mxu0 %v348
    %423 = vmatpush1.bf16.msra.mxu0 %v347
    %424 = vmatprep.subr.bf16.mxu0 %v346
    %425 = vmatpush1.bf16.msra.mxu0 %v345
    %426 = vmatprep.subr.bf16.mxu0 %v344
    %427 = vmatpush1.bf16.msra.mxu0 %v343
    %428 = vmatprep.subr.bf16.mxu0 %v342
    %429 = vmatpush1.bf16.msra.mxu0 %v341
    %430 = vmatprep.subr.bf16.mxu0 %v340
    %431 = vmatpush1.bf16.msra.mxu0 %v339
    %432 = vmatprep.subr.bf16.mxu0 0
    %433 = vmatpush2.bf16.msra.mxu0 0
    %434 = vmatprep.subr.bf16.mxu0 0
    %435 = vmatpush2.bf16.msra.mxu0 0
    %436 = vmatprep.subr.bf16.mxu0 0
    %437 = vmatpush2.bf16.msra.mxu0 0
    %438 = vmatprep.subr.bf16.mxu0 0
    %439 = vmatpush2.bf16.msra.mxu0 0
    %440 = vmatprep.subr.bf16.mxu0 0
    %441 = vmatpush2.bf16.msra.mxu0 0
    %442 = vmatprep.subr.bf16.mxu0 0
    %443 = vmatpush2.bf16.msra.mxu0 0
    %444 = vmatprep.subr.bf16.mxu0 0
    %445 = vmatpush2.bf16.msra.mxu0 0
    %446 = vmatprep.subr.bf16.mxu0 0
    %447 = vmatpush2.bf16.msra.mxu0 0
    %448 = vmatprep.mubr.bf16.mxu0 0
    %449 = vmatmul.mubr.bf16.gmra.mxu0 %v260
    %v450 = vpop.f32.mrf.mxu0
    %v451 = vadd.f32 %v284, %v450
    %v452 = vpop.f32.mrf.mxu0
    %v453 = vadd.f32 %v288, %v452
    %v454 = vpop.f32.mrf.mxu0
    %v455 = vpop.f32.mrf.mxu0
    %456 = vdwg.mxu0
    %v457 = vmax.f32 %v451, 0.0
    %v458 = vmax.f32 %v453, 0.0
    %v459 = vmax.f32 %v457, %v458
    %v460 = vmax.f32 %v415, %v459
    %461 = vmatprep.subr.bf16.mxu0 %v354
    %462 = vmatpush1.bf16.msra.mxu0 %v353
    %463 = vmatprep.subr.bf16.mxu0 %v352
    %464 = vmatpush1.bf16.msra.mxu0 %v351
    %465 = vmatprep.subr.bf16.mxu0 %v350
    %466 = vmatpush1.bf16.msra.mxu0 %v349
    %467 = vmatprep.subr.bf16.mxu0 %v348
    %468 = vmatpush1.bf16.msra.mxu0 %v347
    %469 = vmatprep.subr.bf16.mxu0 %v346
    %470 = vmatpush1.bf16.msra.mxu0 %v345
    %471 = vmatprep.subr.bf16.mxu0 %v344
    %472 = vmatpush1.bf16.msra.mxu0 %v343
    %473 = vmatprep.subr.bf16.mxu0 %v342
    %474 = vmatpush1.bf16.msra.mxu0 %v341
    %475 = vmatprep.subr.bf16.mxu0 %v340
    %476 = vmatpush1.bf16.msra.mxu0 %v339
    %477 = vmatprep.subr.bf16.mxu0 0
    %478 = vmatpush2.bf16.msra.mxu0 0
    %479 = vmatprep.subr.bf16.mxu0 0
    %480 = vmatpush2.bf16.msra.mxu0 0
    %481 = vmatprep.subr.bf16.mxu0 0
    %482 = vmatpush2.bf16.msra.mxu0 0
    %483 = vmatprep.subr.bf16.mxu0 0
    %484 = vmatpush2.bf16.msra.mxu0 0
    %485 = vmatprep.subr.bf16.mxu0 0
    %486 = vmatpush2.bf16.msra.mxu0 0
    %487 = vmatprep.subr.bf16.mxu0 0
    %488 = vmatpush2.bf16.msra.mxu0 0
    %489 = vmatprep.subr.bf16.mxu0 0
    %490 = vmatpush2.bf16.msra.mxu0 0
    %491 = vmatprep.subr.bf16.mxu0 0
    %492 = vmatpush2.bf16.msra.mxu0 0
    %493 = vmatprep.mubr.bf16.mxu0 0
    %494 = vmatmul.mubr.bf16.gmra.mxu0 %v261
    %v495 = vpop.f32.mrf.mxu0
    %v496 = vadd.f32 %v284, %v495
    %v497 = vpop.f32.mrf.mxu0
    %v498 = vadd.f32 %v288, %v497
    %v499 = vpop.f32.mrf.mxu0
    %v500 = vpop.f32.mrf.mxu0
    %501 = vdwg.mxu0
    %v502 = vmax.f32 %v496, 0.0
    %v503 = vmax.f32 %v498, 0.0
    %v504 = vmax.f32 %v502, %v503
    %v505 = vmax.f32 %v460, %v504
    %506 = vmatprep.subr.bf16.mxu0 %v354
    %507 = vmatpush1.bf16.msra.mxu0 %v353
    %508 = vmatprep.subr.bf16.mxu0 %v352
    %509 = vmatpush1.bf16.msra.mxu0 %v351
    %510 = vmatprep.subr.bf16.mxu0 %v350
    %511 = vmatpush1.bf16.msra.mxu0 %v349
    %512 = vmatprep.subr.bf16.mxu0 %v348
    %513 = vmatpush1.bf16.msra.mxu0 %v347
    %514 = vmatprep.subr.bf16.mxu0 %v346
    %515 = vmatpush1.bf16.msra.mxu0 %v345
    %516 = vmatprep.subr.bf16.mxu0 %v344
    %517 = vmatpush1.bf16.msra.mxu0 %v343
    %518 = vmatprep.subr.bf16.mxu0 %v342
    %519 = vmatpush1.bf16.msra.mxu0 %v341
    %520 = vmatprep.subr.bf16.mxu0 %v340
    %521 = vmatpush1.bf16.msra.mxu0 %v339
    %522 = vmatprep.subr.bf16.mxu0 0
    %523 = vmatpush2.bf16.msra.mxu0 0
    %524 = vmatprep.subr.bf16.mxu0 0
    %525 = vmatpush2.bf16.msra.mxu0 0
    %526 = vmatprep.subr.bf16.mxu0 0
    %527 = vmatpush2.bf16.msra.mxu0 0
    %528 = vmatprep.subr.bf16.mxu0 0
    %529 = vmatpush2.bf16.msra.mxu0 0
    %530 = vmatprep.subr.bf16.mxu0 0
    %531 = vmatpush2.bf16.msra.mxu0 0
    %532 = vmatprep.subr.bf16.mxu0 0
    %533 = vmatpush2.bf16.msra.mxu0 0
    %534 = vmatprep.subr.bf16.mxu0 0
    %535 = vmatpush2.bf16.msra.mxu0 0
    %536 = vmatprep.subr.bf16.mxu0 0
    %537 = vmatpush2.bf16.msra.mxu0 0
    %538 = vmatprep.mubr.bf16.mxu0 0
    %539 = vmatmul.mubr.bf16.gmra.mxu0 %v262
    %v540 = vpop.f32.mrf.mxu0
    %v541 = vadd.f32 %v284, %v540
    %v542 = vpop.f32.mrf.mxu0
    %v543 = vadd.f32 %v288, %v542
    %v544 = vpop.f32.mrf.mxu0
    %v545 = vpop.f32.mrf.mxu0
    %546 = vdwg.mxu0
    %v547 = vmax.f32 %v541, 0.0
    %v548 = vmax.f32 %v543, 0.0
    %v549 = vmax.f32 %v547, %v548
    %v550 = vmax.f32 %v505, %v549
    %551 = vst [vmem:[#allocation10] sm:$0xff] %v550
    // Predicated region
    $region38: #{tpu_custom_call.1} parent=1 // pred_check
      _
    $region39: #{tpu_custom_call.1} parent=1 // pred_check_branch
      %553 = sbr.rel (0) target = $region41
    $region40: #{tpu_custom_call.1} parent=1 // pred_region
      %s555 = ssub.s32 128, 128
      %556 = vsyncadd [#allocation4], %s555
      %s558 = sshll.u32 [#allocation10], 4
      %s559 = int_to_ptr.vmem [resolvable:$true] %s558
      %561 = dma.vmem_to_hbm [thread:$0]  %s559, 128, %s5, [#allocation4]
    $region41: #{tpu_custom_call.1} parent=1 // pred_fallthru
      _
    // Predicated region
    $region42: #{tpu_custom_call.1} parent=1 // pred_check
      _
    $region43: #{tpu_custom_call.1} parent=1 // pred_check_branch
      %563 = sbr.rel (0) target = $region45
    $region44: #{tpu_custom_call.1} parent=1 // pred_region
      %564 = dma.done [#allocation4], 128
    $region45: #{tpu_custom_call.1} parent=1 // pred_fallthru
      _
    %565 = vsyncpa [#allocation3], 1
    %566 = vsyncpa [#allocation6], 1
    %567 = vsyncpa [#allocation9], 1
    %568 = vsyncpa [#allocation4], 1

</llo_original>
